<compile_context>
chip_gen: v5e
topology: v5e:2x2
jax: 0.10.0
libtpu: 0.0.40
codegen_flags: <defaults>
</compile_context>

<pallas_src>
import functools

import jax
import jax.numpy as jnp
from jax import lax
from jax.experimental import pallas as pl
from jax.experimental.pallas import tpu as pltpu

IN_CHANNELS = 2
DEPTH = 3
M = 4

# Fixed sublane layout of the in-kernel staging scratch:
#   rows [k*TAP_ROWS, k*TAP_ROWS + C) : conv tap k (k=0: x_{l-1}, k=1: x_l, k=2: x_{l+1})
#   row  ONES_ROW                     : constant 1.0 (folds the bias into the matmul)
TAP_ROWS = 8
ONES_ROW = 3 * TAP_ROWS          # 24
STACK_ROWS = 32                  # padded K dim of every weight matmul


# ----------------------------- parameters -----------------------------------
def _down_channels(in_channels=IN_CHANNELS, depth=DEPTH, m=M):
    chans, c = [], in_channels
    for i in range(depth):
        o = m * 2 ** i
        chans.append((c, o))
        c = o
    return chans


def init_params(key):
    """Deterministic synthetic weights with the shapes UnetV5.__init__ implies."""
    chans = _down_channels()
    params = {"down": [], "up": []}
    keys = jax.random.split(key, 4 * DEPTH)
    ki = 0
    # down_convs[i]: Conv1d(ci -> co, k=3, padding='same'), weight (co, ci, 3)
    for (ci, co) in chans:
        w = jax.random.normal(keys[ki], (co, ci, 3), jnp.float32) / jnp.sqrt(3.0 * ci)
        b = jax.random.normal(keys[ki + 1], (co,), jnp.float32) * 0.1
        params["down"].append((w, b))
        ki += 2
    # up_convs (after insert(0, ...)): [CT(co_last->ci_last), ..., CT(co_0->ci_0)]
    # ConvTranspose1d(co -> ci, k=2, stride=2): weight (co, ci, 2)
    for (ci, co) in reversed(chans):
        w = jax.random.normal(keys[ki], (co, ci, 2), jnp.float32) / jnp.sqrt(2.0 * co)
        b = jax.random.normal(keys[ki + 1], (ci,), jnp.float32) * 0.1
        params["up"].append((w, b))
        ki += 2
    return params


# ----------------------------- host-side weight packing ----------------------
def _pack_down(w, b):
    # (co, ci, 3) + (co,) -> (co, STACK_ROWS): tap k occupies cols [k*8, k*8+ci), bias col 24.
    co, ci, _ = w.shape
    out = jnp.zeros((co, STACK_ROWS), jnp.float32)
    for k in range(3):
        out = out.at[:, k * TAP_ROWS:k * TAP_ROWS + ci].set(w[:, :, k])
    return out.at[:, ONES_ROW].set(b)


def _pack_up(w, b):
    # (cin, cout, 2) + (cout,) -> (2, cout, STACK_ROWS): tap-k weight^T in cols [0, cin),
    # bias in col 24 (each output position is produced by exactly one tap, so bias once).
    cin, cout, _ = w.shape
    out = jnp.zeros((2, cout, STACK_ROWS), jnp.float32)
    for k in range(2):
        out = out.at[k, :, :cin].set(w[:, :, k].T)
        out = out.at[k, :, ONES_ROW].set(b)
    return out


# ----------------------------- the Pallas kernel ------------------------------
def _lane_roll(x, shift):
    # out[:, q] = x[:, (q - shift) mod n]  (jnp.roll convention), lane axis.
    n = x.shape[-1]
    return pltpu.roll(x, shift % n, axis=x.ndim - 1)


def _unet_kernel(depth, seg_len, *refs):
    x_ref = refs[0]
    down_refs = refs[1:1 + depth]
    up_refs = refs[1 + depth:1 + 2 * depth]
    o_ref = refs[1 + 2 * depth]
    stack_ref = refs[2 + 2 * depth]

    dot = functools.partial(jnp.dot, preferred_element_type=jnp.float32)
    L = seg_len
    ltot = x_ref.shape[-1]
    # lane offset of each column inside its batch segment (segments are L lanes wide)
    lane = lax.broadcasted_iota(jnp.int32, (1, ltot), 1) % L

    # Zero the staging scratch once (tap slots narrower than TAP_ROWS stay zero) and install
    # the constant-one row used to fold biases into the matmuls.
    stack_ref[...] = jnp.zeros_like(stack_ref)
    stack_ref[ONES_ROW:ONES_ROW + 1, :] = jnp.ones((1, ltot), jnp.float32)

    cur = x_ref[...]            # (C, N*L), dilation 1: every lane is a valid sample
    skips = []
    d = 1                       # lane dilation: sample p of a segment sits at lane d*p

    # ---- down path: Conv1d(k=3, 'same') -> tanh -> MaxPool1d(2) ----
    for i in range(depth):
        ci = cur.shape[0]
        x_prev = jnp.where(lane == 0, 0.0, _lane_roll(cur, d))        # x_{p-1} ('same' pad)
        x_next = jnp.where(lane == L - d, 0.0, _lane_roll(cur, -d))   # x_{p+1} ('same' pad)
        stack_ref[0:ci, :] = x_prev
        stack_ref[TAP_ROWS:TAP_ROWS + ci, :] = cur
        stack_ref[2 * TAP_ROWS:2 * TAP_ROWS + ci, :] = x_next
        # fused taps + bias: one (co, 32) x (32, N*L) MXU matmul
        y = jnp.tanh(dot(down_refs[i][...], stack_ref[...]))
        # MaxPool1d(2): partner of sample 2j is 2j+1 (= +d lanes); result has dilation 2d
        pooled = jnp.maximum(y, _lane_roll(y, -d))
        skips.append(pooled)
        cur = pooled
        d *= 2

    # ---- up path: ConvTranspose1d(k=2, stride=2) [+ skip -> tanh] ----
    for j in range(depth):
        cin = cur.shape[0]
        stack_ref[0:cin, :] = cur
        y0 = dot(up_refs[j][0], stack_ref[...])        # even output samples (+ bias)
        y1 = dot(up_refs[j][1], stack_ref[...])        # odd  output samples (+ bias)
        half = d // 2
        # output sample 2m+k sits at lane d*m + half*k  ->  select y0 / shifted y1 per lane
        up = jnp.where(lane % d < half, y0, _lane_roll(y1, half))
        if j < depth - 1:
            up = jnp.tanh(up + skips[depth - 2 - j])   # xs[-(j+2)] == skips[depth-2-j]
        cur = up
        d = half

    o_ref[...] = cur


# ----------------------------- wrapper ---------------------------------------
def unet_v5_pallas(x, params):
    n, c0, L = x.shape
    depth = len(params["down"])
    assert L % (2 ** depth) == 0, "sequence length must be divisible by 2**depth"
    assert max(w.shape[1] for w, _ in params["down"]) <= TAP_ROWS
    assert max(w.shape[0] for w, _ in params["up"]) <= ONES_ROW

    # pack the whole batch along the lane axis: (N, C, L) -> (C, N*L)
    x_packed = jnp.transpose(x, (1, 0, 2)).reshape(c0, n * L)
    down_w = [_pack_down(w, b) for (w, b) in params["down"]]
    up_w = [_pack_up(w, b) for (w, b) in params["up"]]
    c_out = params["up"][-1][0].shape[1]

    # Single-program kernel: the working set is a few KB of VMEM, weights are loaded once,
    # and the whole batch is processed on lane-dense tiles.  (For very large batches one
    # would grid over batch chunks -- e.g. two chunks for dual-TensorCore v7x -- but at
    # these sizes one step avoids all per-step pipeline overhead on v5e/v6e/v7x.)
    out = pl.pallas_call(
        functools.partial(_unet_kernel, depth, L),
        out_shape=jax.ShapeDtypeStruct((c_out, n * L), jnp.float32),
        scratch_shapes=[pltpu.VMEM((STACK_ROWS, n * L), jnp.float32)],
    )(x_packed, *down_w, *up_w)

    # (C, N*L) -> (N, C, L)
    return jnp.transpose(out.reshape(c_out, n, L), (1, 0, 2))


# ----------------------------- pure-JAX reference -----------------------------
def unet_v5_reference(x, params):
    depth = len(params["down"])
    xs = [x]
    cur = x
    for i in range(depth):
        w, b = params["down"][i]
        y = lax.conv_general_dilated(cur, w, (1,), "SAME",
                                     dimension_numbers=("NCH", "OIH", "NCH"))
        y = jnp.tanh(y + b[None, :, None])
        y = lax.reduce_window(y, -jnp.inf, lax.max, (1, 1, 2), (1, 1, 2), "VALID")
        xs.append(y)
        cur = y
    for j in range(depth):
        w, b = params["up"][j]  # (cin, cout, 2)
        y0 = jnp.einsum("ncl,co->nol", cur, w[:, :, 0])
        y1 = jnp.einsum("ncl,co->nol", cur, w[:, :, 1])
        nb, co, ll = y0.shape
        up = jnp.stack([y0, y1], axis=-1).reshape(nb, co, 2 * ll) + b[None, :, None]
        if j < depth - 1:
            up = jnp.tanh(up + xs[-(j + 2)])
        cur = up
    return cur


# TODO(synk): load_pretrained_weights / torch state-dict loading is host-side file I/O and is
# intentionally not translated; weights are synthesized deterministically instead.

if __name__ == "__main__":
    key = jax.random.PRNGKey(0)
    pkey, xkey = jax.random.split(key)
    params = init_params(pkey)

    N, C, L = 2, IN_CHANNELS, 64  # L must be divisible by 2**DEPTH
    x = jax.random.normal(xkey, (N, C, L), jnp.float32)

    out = unet_v5_pallas(x, params)
    out = jax.block_until_ready(out)

    ref = unet_v5_reference(x, params)
    assert out.shape == (N, IN_CHANNELS, L), out.shape
    err = float(jnp.max(jnp.abs(out - ref)))
    if err > 1e-4:
        raise AssertionError(f"Pallas/Reference mismatch, max abs err = {err}")
    print("KERNEL_OK")
</pallas_src>

<mosaic_0001>
module attributes {stable_mosaic.version = 11 : i64} {
  func.func @_unet_kernel(%arg0: memref<2x128xf32, #tpu.memory_space<vmem>>, %arg1: memref<4x32xf32, #tpu.memory_space<vmem>>, %arg2: memref<8x32xf32, #tpu.memory_space<vmem>>, %arg3: memref<16x32xf32, #tpu.memory_space<vmem>>, %arg4: memref<2x8x32xf32, #tpu.memory_space<vmem>>, %arg5: memref<2x4x32xf32, #tpu.memory_space<vmem>>, %arg6: memref<2x2x32xf32, #tpu.memory_space<vmem>>, %arg7: memref<2x128xf32, #tpu.memory_space<vmem>>, %arg8: memref<32x128xf32, #tpu.memory_space<vmem>>) attributes {dimension_semantics = [], scalar_prefetch = 0 : i64, scratch_operands = 1 : i64, tpu.core_type = #tpu.core_type<tc>} {
    %0 = tpu.iota {dimensions = array<i32: 1>} : vector<1x128xi32>
    %c64_i32 = arith.constant 64 : i32
    %c0_i32 = arith.constant 0 : i32
    %1 = arith.cmpi eq, %c64_i32, %c0_i32 : i32
    %c1_i32 = arith.constant 1 : i32
    %2 = arith.select %1, %c1_i32, %c64_i32 : i32
    %3 = vector.broadcast %2 : i32 to vector<1x128xi32>
    %4 = arith.remsi %0, %3 : vector<1x128xi32>
    %c0_i32_0 = arith.constant 0 : i32
    %5 = vector.broadcast %c0_i32_0 : i32 to vector<1x128xi32>
    %6 = arith.cmpi ne, %4, %5 : vector<1x128xi32>
    %c0_i32_1 = arith.constant 0 : i32
    %7 = vector.broadcast %c0_i32_1 : i32 to vector<1x128xi32>
    %8 = arith.cmpi slt, %4, %7 : vector<1x128xi32>
    %c0_i32_2 = arith.constant 0 : i32
    %9 = arith.cmpi slt, %2, %c0_i32_2 : i32
    %10 = vector.broadcast %9 : i1 to vector<1x128xi1>
    %11 = vector.broadcast %10 : vector<1x128xi1> to vector<1x128xi1>
    %12 = arith.xori %8, %11 : vector<1x128xi1>
    %13 = arith.andi %12, %6 : vector<1x128xi1>
    %14 = vector.broadcast %2 : i32 to vector<1x128xi32>
    %15 = arith.addi %4, %14 : vector<1x128xi32>
    %16 = arith.select %13, %15, %4 : vector<1x128xi1>, vector<1x128xi32>
    %cst = arith.constant 0.000000e+00 : f32
    %17 = vector.broadcast %cst : f32 to vector<32x128xf32>
    %c0 = arith.constant 0 : index
    %c0_3 = arith.constant 0 : index
    %18 = vector.load %arg8[%c0, %c0_3] : memref<32x128xf32, #tpu.memory_space<vmem>>, vector<32x128xf32>
    tpu.vector_store %arg8[%c0, %c0_3], %17 {strides = array<i32>} : memref<32x128xf32, #tpu.memory_space<vmem>>, vector<32x128xf32>,
    %cst_4 = arith.constant 1.000000e+00 : f32
    %19 = vector.broadcast %cst_4 : f32 to vector<1x128xf32>
    %c24 = arith.constant 24 : index
    %c0_5 = arith.constant 0 : index
    %20 = vector.load %arg8[%c24, %c0_5] : memref<32x128xf32, #tpu.memory_space<vmem>>, vector<1x128xf32>
    tpu.vector_store %arg8[%c24, %c0_5], %19 {strides = array<i32>} : memref<32x128xf32, #tpu.memory_space<vmem>>, vector<1x128xf32>,
    %c0_6 = arith.constant 0 : index
    %c0_7 = arith.constant 0 : index
    %21 = vector.load %arg0[%c0_6, %c0_7] : memref<2x128xf32, #tpu.memory_space<vmem>>, vector<2x128xf32>
    %c0_i32_8 = arith.constant 0 : i32
    %22 = vector.broadcast %c0_i32_8 : i32 to vector<1x128xi32>
    %23 = arith.cmpi eq, %16, %22 : vector<1x128xi32>
    %c1_i32_9 = arith.constant 1 : i32
    %24 = tpu.dynamic_rotate %21 by %c1_i32_9 dim 1 : vector<2x128xf32>, i32 -> vector<2x128xf32>
    %cst_10 = arith.constant 0.000000e+00 : f32
    %25 = vector.shape_cast %23 : vector<1x128xi1> to vector<1x128xi1>
    %26 = vector.broadcast %25 : vector<1x128xi1> to vector<2x128xi1>
    %27 = vector.broadcast %cst_10 : f32 to vector<2x128xf32>
    %28 = arith.select %26, %27, %24 : vector<2x128xi1>, vector<2x128xf32>
    %c63_i32 = arith.constant 63 : i32
    %29 = vector.broadcast %c63_i32 : i32 to vector<1x128xi32>
    %30 = arith.cmpi eq, %16, %29 : vector<1x128xi32>
    %c127_i32 = arith.constant 127 : i32
    %31 = tpu.dynamic_rotate %21 by %c127_i32 dim 1 : vector<2x128xf32>, i32 -> vector<2x128xf32>
    %cst_11 = arith.constant 0.000000e+00 : f32
    %32 = vector.shape_cast %30 : vector<1x128xi1> to vector<1x128xi1>
    %33 = vector.broadcast %32 : vector<1x128xi1> to vector<2x128xi1>
    %34 = vector.broadcast %cst_11 : f32 to vector<2x128xf32>
    %35 = arith.select %33, %34, %31 : vector<2x128xi1>, vector<2x128xf32>
    %c0_12 = arith.constant 0 : index
    %c0_13 = arith.constant 0 : index
    %36 = vector.load %arg8[%c0_12, %c0_13] : memref<32x128xf32, #tpu.memory_space<vmem>>, vector<2x128xf32>
    tpu.vector_store %arg8[%c0_12, %c0_13], %28 {strides = array<i32>} : memref<32x128xf32, #tpu.memory_space<vmem>>, vector<2x128xf32>,
    %c8 = arith.constant 8 : index
    %c0_14 = arith.constant 0 : index
    %37 = vector.load %arg8[%c8, %c0_14] : memref<32x128xf32, #tpu.memory_space<vmem>>, vector<2x128xf32>
    tpu.vector_store %arg8[%c8, %c0_14], %21 {strides = array<i32>} : memref<32x128xf32, #tpu.memory_space<vmem>>, vector<2x128xf32>,
    %c16 = arith.constant 16 : index
    %c0_15 = arith.constant 0 : index
    %38 = vector.load %arg8[%c16, %c0_15] : memref<32x128xf32, #tpu.memory_space<vmem>>, vector<2x128xf32>
    tpu.vector_store %arg8[%c16, %c0_15], %35 {strides = array<i32>} : memref<32x128xf32, #tpu.memory_space<vmem>>, vector<2x128xf32>,
    %c0_16 = arith.constant 0 : index
    %c0_17 = arith.constant 0 : index
    %39 = vector.load %arg1[%c0_16, %c0_17] : memref<4x32xf32, #tpu.memory_space<vmem>>, vector<4x32xf32>
    %c0_18 = arith.constant 0 : index
    %c0_19 = arith.constant 0 : index
    %40 = vector.load %arg8[%c0_18, %c0_19] : memref<32x128xf32, #tpu.memory_space<vmem>>, vector<32x128xf32>
    %cst_20 = arith.constant dense<0.000000e+00> : vector<4x128xf32>
    %41 = tpu.matmul %39, %40, %cst_20 {dimension_numbers = #tpu.dot_dimension_numbers<[1], [0], [0], [1], [0, 0, 1, 1], [], []>} : vector<4x32xf32>, vector<32x128xf32>, vector<4x128xf32> -> vector<4x128xf32>
    %42 = math.tanh %41 : vector<4x128xf32>
    %c127_i32_21 = arith.constant 127 : i32
    %43 = tpu.dynamic_rotate %42 by %c127_i32_21 dim 1 : vector<4x128xf32>, i32 -> vector<4x128xf32>
    %44 = arith.maximumf %42, %43 : vector<4x128xf32>
    %c0_i32_22 = arith.constant 0 : i32
    %45 = vector.broadcast %c0_i32_22 : i32 to vector<1x128xi32>
    %46 = arith.cmpi eq, %16, %45 : vector<1x128xi32>
    %c2_i32 = arith.constant 2 : i32
    %47 = tpu.dynamic_rotate %44 by %c2_i32 dim 1 : vector<4x128xf32>, i32 -> vector<4x128xf32>
    %cst_23 = arith.constant 0.000000e+00 : f32
    %48 = vector.shape_cast %46 : vector<1x128xi1> to vector<1x128xi1>
    %49 = vector.broadcast %48 : vector<1x128xi1> to vector<4x128xi1>
    %50 = vector.broadcast %cst_23 : f32 to vector<4x128xf32>
    %51 = arith.select %49, %50, %47 : vector<4x128xi1>, vector<4x128xf32>
    %c62_i32 = arith.constant 62 : i32
    %52 = vector.broadcast %c62_i32 : i32 to vector<1x128xi32>
    %53 = arith.cmpi eq, %16, %52 : vector<1x128xi32>
    %c126_i32 = arith.constant 126 : i32
    %54 = tpu.dynamic_rotate %44 by %c126_i32 dim 1 : vector<4x128xf32>, i32 -> vector<4x128xf32>
    %cst_24 = arith.constant 0.000000e+00 : f32
    %55 = vector.shape_cast %53 : vector<1x128xi1> to vector<1x128xi1>
    %56 = vector.broadcast %55 : vector<1x128xi1> to vector<4x128xi1>
    %57 = vector.broadcast %cst_24 : f32 to vector<4x128xf32>
    %58 = arith.select %56, %57, %54 : vector<4x128xi1>, vector<4x128xf32>
    %c0_25 = arith.constant 0 : index
    %c0_26 = arith.constant 0 : index
    %59 = vector.load %arg8[%c0_25, %c0_26] : memref<32x128xf32, #tpu.memory_space<vmem>>, vector<4x128xf32>
    tpu.vector_store %arg8[%c0_25, %c0_26], %51 {strides = array<i32>} : memref<32x128xf32, #tpu.memory_space<vmem>>, vector<4x128xf32>,
    %c8_27 = arith.constant 8 : index
    %c0_28 = arith.constant 0 : index
    %60 = vector.load %arg8[%c8_27, %c0_28] : memref<32x128xf32, #tpu.memory_space<vmem>>, vector<4x128xf32>
    tpu.vector_store %arg8[%c8_27, %c0_28], %44 {strides = array<i32>} : memref<32x128xf32, #tpu.memory_space<vmem>>, vector<4x128xf32>,
    %c16_29 = arith.constant 16 : index
    %c0_30 = arith.constant 0 : index
    %61 = vector.load %arg8[%c16_29, %c0_30] : memref<32x128xf32, #tpu.memory_space<vmem>>, vector<4x128xf32>
    tpu.vector_store %arg8[%c16_29, %c0_30], %58 {strides = array<i32>} : memref<32x128xf32, #tpu.memory_space<vmem>>, vector<4x128xf32>,
    %c0_31 = arith.constant 0 : index
    %c0_32 = arith.constant 0 : index
    %62 = vector.load %arg2[%c0_31, %c0_32] : memref<8x32xf32, #tpu.memory_space<vmem>>, vector<8x32xf32>
    %c0_33 = arith.constant 0 : index
    %c0_34 = arith.constant 0 : index
    %63 = vector.load %arg8[%c0_33, %c0_34] : memref<32x128xf32, #tpu.memory_space<vmem>>, vector<32x128xf32>
    %cst_35 = arith.constant dense<0.000000e+00> : vector<8x128xf32>
    %64 = tpu.matmul %62, %63, %cst_35 {dimension_numbers = #tpu.dot_dimension_numbers<[1], [0], [0], [1], [0, 0, 1, 1], [], []>} : vector<8x32xf32>, vector<32x128xf32>, vector<8x128xf32> -> vector<8x128xf32>
    %65 = math.tanh %64 : vector<8x128xf32>
    %c126_i32_36 = arith.constant 126 : i32
    %66 = tpu.dynamic_rotate %65 by %c126_i32_36 dim 1 : vector<8x128xf32>, i32 -> vector<8x128xf32>
    %67 = arith.maximumf %65, %66 : vector<8x128xf32>
    %c0_i32_37 = arith.constant 0 : i32
    %68 = vector.broadcast %c0_i32_37 : i32 to vector<1x128xi32>
    %69 = arith.cmpi eq, %16, %68 : vector<1x128xi32>
    %c4_i32 = arith.constant 4 : i32
    %70 = tpu.dynamic_rotate %67 by %c4_i32 dim 1 : vector<8x128xf32>, i32 -> vector<8x128xf32>
    %cst_38 = arith.constant 0.000000e+00 : f32
    %71 = vector.shape_cast %69 : vector<1x128xi1> to vector<1x128xi1>
    %72 = vector.broadcast %71 : vector<1x128xi1> to vector<8x128xi1>
    %73 = vector.broadcast %cst_38 : f32 to vector<8x128xf32>
    %74 = arith.select %72, %73, %70 : vector<8x128xi1>, vector<8x128xf32>
    %c60_i32 = arith.constant 60 : i32
    %75 = vector.broadcast %c60_i32 : i32 to vector<1x128xi32>
    %76 = arith.cmpi eq, %16, %75 : vector<1x128xi32>
    %c124_i32 = arith.constant 124 : i32
    %77 = tpu.dynamic_rotate %67 by %c124_i32 dim 1 : vector<8x128xf32>, i32 -> vector<8x128xf32>
    %cst_39 = arith.constant 0.000000e+00 : f32
    %78 = vector.shape_cast %76 : vector<1x128xi1> to vector<1x128xi1>
    %79 = vector.broadcast %78 : vector<1x128xi1> to vector<8x128xi1>
    %80 = vector.broadcast %cst_39 : f32 to vector<8x128xf32>
    %81 = arith.select %79, %80, %77 : vector<8x128xi1>, vector<8x128xf32>
    %c0_40 = arith.constant 0 : index
    %c0_41 = arith.constant 0 : index
    %82 = vector.load %arg8[%c0_40, %c0_41] : memref<32x128xf32, #tpu.memory_space<vmem>>, vector<8x128xf32>
    tpu.vector_store %arg8[%c0_40, %c0_41], %74 {strides = array<i32>} : memref<32x128xf32, #tpu.memory_space<vmem>>, vector<8x128xf32>,
    %c8_42 = arith.constant 8 : index
    %c0_43 = arith.constant 0 : index
    %83 = vector.load %arg8[%c8_42, %c0_43] : memref<32x128xf32, #tpu.memory_space<vmem>>, vector<8x128xf32>
    tpu.vector_store %arg8[%c8_42, %c0_43], %67 {strides = array<i32>} : memref<32x128xf32, #tpu.memory_space<vmem>>, vector<8x128xf32>,
    %c16_44 = arith.constant 16 : index
    %c0_45 = arith.constant 0 : index
    %84 = vector.load %arg8[%c16_44, %c0_45] : memref<32x128xf32, #tpu.memory_space<vmem>>, vector<8x128xf32>
    tpu.vector_store %arg8[%c16_44, %c0_45], %81 {strides = array<i32>} : memref<32x128xf32, #tpu.memory_space<vmem>>, vector<8x128xf32>,
    %c0_46 = arith.constant 0 : index
    %c0_47 = arith.constant 0 : index
    %85 = vector.load %arg3[%c0_46, %c0_47] : memref<16x32xf32, #tpu.memory_space<vmem>>, vector<16x32xf32>
    %c0_48 = arith.constant 0 : index
    %c0_49 = arith.constant 0 : index
    %86 = vector.load %arg8[%c0_48, %c0_49] : memref<32x128xf32, #tpu.memory_space<vmem>>, vector<32x128xf32>
    %cst_50 = arith.constant dense<0.000000e+00> : vector<16x128xf32>
    %87 = tpu.matmul %85, %86, %cst_50 {dimension_numbers = #tpu.dot_dimension_numbers<[1], [0], [0], [1], [0, 0, 1, 1], [], []>} : vector<16x32xf32>, vector<32x128xf32>, vector<16x128xf32> -> vector<16x128xf32>
    %88 = math.tanh %87 : vector<16x128xf32>
    %c124_i32_51 = arith.constant 124 : i32
    %89 = tpu.dynamic_rotate %88 by %c124_i32_51 dim 1 : vector<16x128xf32>, i32 -> vector<16x128xf32>
    %90 = arith.maximumf %88, %89 : vector<16x128xf32>
    %c0_52 = arith.constant 0 : index
    %c0_53 = arith.constant 0 : index
    %91 = vector.load %arg8[%c0_52, %c0_53] : memref<32x128xf32, #tpu.memory_space<vmem>>, vector<16x128xf32>
    tpu.vector_store %arg8[%c0_52, %c0_53], %90 {strides = array<i32>} : memref<32x128xf32, #tpu.memory_space<vmem>>, vector<16x128xf32>,
    %c0_54 = arith.constant 0 : index
    %c0_55 = arith.constant 0 : index
    %c0_56 = arith.constant 0 : index
    %92 = vector.load %arg4[%c0_54, %c0_55, %c0_56] : memref<2x8x32xf32, #tpu.memory_space<vmem>>, vector<1x8x32xf32>
    %93 = vector.shape_cast %92 : vector<1x8x32xf32> to vector<8x32xf32>
    %c0_57 = arith.constant 0 : index
    %c0_58 = arith.constant 0 : index
    %94 = vector.load %arg8[%c0_57, %c0_58] : memref<32x128xf32, #tpu.memory_space<vmem>>, vector<32x128xf32>
    %cst_59 = arith.constant dense<0.000000e+00> : vector<8x128xf32>
    %95 = tpu.matmul %93, %94, %cst_59 {dimension_numbers = #tpu.dot_dimension_numbers<[1], [0], [0], [1], [0, 0, 1, 1], [], []>} : vector<8x32xf32>, vector<32x128xf32>, vector<8x128xf32> -> vector<8x128xf32>
    %c1 = arith.constant 1 : index
    %c0_60 = arith.constant 0 : index
    %c0_61 = arith.constant 0 : index
    %96 = vector.load %arg4[%c1, %c0_60, %c0_61] : memref<2x8x32xf32, #tpu.memory_space<vmem>>, vector<1x8x32xf32>
    %97 = vector.shape_cast %96 : vector<1x8x32xf32> to vector<8x32xf32>
    %c0_62 = arith.constant 0 : index
    %c0_63 = arith.constant 0 : index
    %98 = vector.load %arg8[%c0_62, %c0_63] : memref<32x128xf32, #tpu.memory_space<vmem>>, vector<32x128xf32>
    %cst_64 = arith.constant dense<0.000000e+00> : vector<8x128xf32>
    %99 = tpu.matmul %97, %98, %cst_64 {dimension_numbers = #tpu.dot_dimension_numbers<[1], [0], [0], [1], [0, 0, 1, 1], [], []>} : vector<8x32xf32>, vector<32x128xf32>, vector<8x128xf32> -> vector<8x128xf32>
    %c8_i32 = arith.constant 8 : i32
    %c0_i32_65 = arith.constant 0 : i32
    %100 = arith.cmpi eq, %c8_i32, %c0_i32_65 : i32
    %c1_i32_66 = arith.constant 1 : i32
    %101 = arith.select %100, %c1_i32_66, %c8_i32 : i32
    %102 = vector.broadcast %101 : i32 to vector<1x128xi32>
    %103 = arith.remsi %16, %102 : vector<1x128xi32>
    %c0_i32_67 = arith.constant 0 : i32
    %104 = vector.broadcast %c0_i32_67 : i32 to vector<1x128xi32>
    %105 = arith.cmpi ne, %103, %104 : vector<1x128xi32>
    %c0_i32_68 = arith.constant 0 : i32
    %106 = vector.broadcast %c0_i32_68 : i32 to vector<1x128xi32>
    %107 = arith.cmpi slt, %103, %106 : vector<1x128xi32>
    %c0_i32_69 = arith.constant 0 : i32
    %108 = arith.cmpi slt, %101, %c0_i32_69 : i32
    %109 = vector.broadcast %108 : i1 to vector<1x128xi1>
    %110 = vector.broadcast %109 : vector<1x128xi1> to vector<1x128xi1>
    %111 = arith.xori %107, %110 : vector<1x128xi1>
    %112 = arith.andi %111, %105 : vector<1x128xi1>
    %113 = vector.broadcast %101 : i32 to vector<1x128xi32>
    %114 = arith.addi %103, %113 : vector<1x128xi32>
    %115 = arith.select %112, %114, %103 : vector<1x128xi1>, vector<1x128xi32>
    %c4_i32_70 = arith.constant 4 : i32
    %116 = vector.broadcast %c4_i32_70 : i32 to vector<1x128xi32>
    %117 = arith.cmpi slt, %115, %116 : vector<1x128xi32>
    %c4_i32_71 = arith.constant 4 : i32
    %118 = tpu.dynamic_rotate %99 by %c4_i32_71 dim 1 : vector<8x128xf32>, i32 -> vector<8x128xf32>
    %119 = vector.shape_cast %117 : vector<1x128xi1> to vector<1x128xi1>
    %120 = vector.broadcast %119 : vector<1x128xi1> to vector<8x128xi1>
    %121 = arith.select %120, %95, %118 : vector<8x128xi1>, vector<8x128xf32>
    %122 = arith.addf %121, %67 : vector<8x128xf32>
    %123 = math.tanh %122 : vector<8x128xf32>
    %c0_72 = arith.constant 0 : index
    %c0_73 = arith.constant 0 : index
    %124 = vector.load %arg8[%c0_72, %c0_73] : memref<32x128xf32, #tpu.memory_space<vmem>>, vector<8x128xf32>
    tpu.vector_store %arg8[%c0_72, %c0_73], %123 {strides = array<i32>} : memref<32x128xf32, #tpu.memory_space<vmem>>, vector<8x128xf32>,
    %c0_74 = arith.constant 0 : index
    %c0_75 = arith.constant 0 : index
    %c0_76 = arith.constant 0 : index
    %125 = vector.load %arg5[%c0_74, %c0_75, %c0_76] : memref<2x4x32xf32, #tpu.memory_space<vmem>>, vector<1x4x32xf32>
    %126 = vector.shape_cast %125 : vector<1x4x32xf32> to vector<4x32xf32>
    %c0_77 = arith.constant 0 : index
    %c0_78 = arith.constant 0 : index
    %127 = vector.load %arg8[%c0_77, %c0_78] : memref<32x128xf32, #tpu.memory_space<vmem>>, vector<32x128xf32>
    %cst_79 = arith.constant dense<0.000000e+00> : vector<4x128xf32>
    %128 = tpu.matmul %126, %127, %cst_79 {dimension_numbers = #tpu.dot_dimension_numbers<[1], [0], [0], [1], [0, 0, 1, 1], [], []>} : vector<4x32xf32>, vector<32x128xf32>, vector<4x128xf32> -> vector<4x128xf32>
    %c1_80 = arith.constant 1 : index
    %c0_81 = arith.constant 0 : index
    %c0_82 = arith.constant 0 : index
    %129 = vector.load %arg5[%c1_80, %c0_81, %c0_82] : memref<2x4x32xf32, #tpu.memory_space<vmem>>, vector<1x4x32xf32>
    %130 = vector.shape_cast %129 : vector<1x4x32xf32> to vector<4x32xf32>
    %c0_83 = arith.constant 0 : index
    %c0_84 = arith.constant 0 : index
    %131 = vector.load %arg8[%c0_83, %c0_84] : memref<32x128xf32, #tpu.memory_space<vmem>>, vector<32x128xf32>
    %cst_85 = arith.constant dense<0.000000e+00> : vector<4x128xf32>
    %132 = tpu.matmul %130, %131, %cst_85 {dimension_numbers = #tpu.dot_dimension_numbers<[1], [0], [0], [1], [0, 0, 1, 1], [], []>} : vector<4x32xf32>, vector<32x128xf32>, vector<4x128xf32> -> vector<4x128xf32>
    %c4_i32_86 = arith.constant 4 : i32
    %c0_i32_87 = arith.constant 0 : i32
    %133 = arith.cmpi eq, %c4_i32_86, %c0_i32_87 : i32
    %c1_i32_88 = arith.constant 1 : i32
    %134 = arith.select %133, %c1_i32_88, %c4_i32_86 : i32
    %135 = vector.broadcast %134 : i32 to vector<1x128xi32>
    %136 = arith.remsi %16, %135 : vector<1x128xi32>
    %c0_i32_89 = arith.constant 0 : i32
    %137 = vector.broadcast %c0_i32_89 : i32 to vector<1x128xi32>
    %138 = arith.cmpi ne, %136, %137 : vector<1x128xi32>
    %c0_i32_90 = arith.constant 0 : i32
    %139 = vector.broadcast %c0_i32_90 : i32 to vector<1x128xi32>
    %140 = arith.cmpi slt, %136, %139 : vector<1x128xi32>
    %c0_i32_91 = arith.constant 0 : i32
    %141 = arith.cmpi slt, %134, %c0_i32_91 : i32
    %142 = vector.broadcast %141 : i1 to vector<1x128xi1>
    %143 = vector.broadcast %142 : vector<1x128xi1> to vector<1x128xi1>
    %144 = arith.xori %140, %143 : vector<1x128xi1>
    %145 = arith.andi %144, %138 : vector<1x128xi1>
    %146 = vector.broadcast %134 : i32 to vector<1x128xi32>
    %147 = arith.addi %136, %146 : vector<1x128xi32>
    %148 = arith.select %145, %147, %136 : vector<1x128xi1>, vector<1x128xi32>
    %c2_i32_92 = arith.constant 2 : i32
    %149 = vector.broadcast %c2_i32_92 : i32 to vector<1x128xi32>
    %150 = arith.cmpi slt, %148, %149 : vector<1x128xi32>
    %c2_i32_93 = arith.constant 2 : i32
    %151 = tpu.dynamic_rotate %132 by %c2_i32_93 dim 1 : vector<4x128xf32>, i32 -> vector<4x128xf32>
    %152 = vector.shape_cast %150 : vector<1x128xi1> to vector<1x128xi1>
    %153 = vector.broadcast %152 : vector<1x128xi1> to vector<4x128xi1>
    %154 = arith.select %153, %128, %151 : vector<4x128xi1>, vector<4x128xf32>
    %155 = arith.addf %154, %44 : vector<4x128xf32>
    %156 = math.tanh %155 : vector<4x128xf32>
    %c0_94 = arith.constant 0 : index
    %c0_95 = arith.constant 0 : index
    %157 = vector.load %arg8[%c0_94, %c0_95] : memref<32x128xf32, #tpu.memory_space<vmem>>, vector<4x128xf32>
    tpu.vector_store %arg8[%c0_94, %c0_95], %156 {strides = array<i32>} : memref<32x128xf32, #tpu.memory_space<vmem>>, vector<4x128xf32>,
    %c0_96 = arith.constant 0 : index
    %c0_97 = arith.constant 0 : index
    %c0_98 = arith.constant 0 : index
    %158 = vector.load %arg6[%c0_96, %c0_97, %c0_98] : memref<2x2x32xf32, #tpu.memory_space<vmem>>, vector<1x2x32xf32>
    %159 = vector.shape_cast %158 : vector<1x2x32xf32> to vector<2x32xf32>
    %c0_99 = arith.constant 0 : index
    %c0_100 = arith.constant 0 : index
    %160 = vector.load %arg8[%c0_99, %c0_100] : memref<32x128xf32, #tpu.memory_space<vmem>>, vector<32x128xf32>
    %cst_101 = arith.constant dense<0.000000e+00> : vector<2x128xf32>
    %161 = tpu.matmul %159, %160, %cst_101 {dimension_numbers = #tpu.dot_dimension_numbers<[1], [0], [0], [1], [0, 0, 1, 1], [], []>} : vector<2x32xf32>, vector<32x128xf32>, vector<2x128xf32> -> vector<2x128xf32>
    %c1_102 = arith.constant 1 : index
    %c0_103 = arith.constant 0 : index
    %c0_104 = arith.constant 0 : index
    %162 = vector.load %arg6[%c1_102, %c0_103, %c0_104] : memref<2x2x32xf32, #tpu.memory_space<vmem>>, vector<1x2x32xf32>
    %163 = vector.shape_cast %162 : vector<1x2x32xf32> to vector<2x32xf32>
    %c0_105 = arith.constant 0 : index
    %c0_106 = arith.constant 0 : index
    %164 = vector.load %arg8[%c0_105, %c0_106] : memref<32x128xf32, #tpu.memory_space<vmem>>, vector<32x128xf32>
    %cst_107 = arith.constant dense<0.000000e+00> : vector<2x128xf32>
    %165 = tpu.matmul %163, %164, %cst_107 {dimension_numbers = #tpu.dot_dimension_numbers<[1], [0], [0], [1], [0, 0, 1, 1], [], []>} : vector<2x32xf32>, vector<32x128xf32>, vector<2x128xf32> -> vector<2x128xf32>
    %c2_i32_108 = arith.constant 2 : i32
    %c0_i32_109 = arith.constant 0 : i32
    %166 = arith.cmpi eq, %c2_i32_108, %c0_i32_109 : i32
    %c1_i32_110 = arith.constant 1 : i32
    %167 = arith.select %166, %c1_i32_110, %c2_i32_108 : i32
    %168 = vector.broadcast %167 : i32 to vector<1x128xi32>
    %169 = arith.remsi %16, %168 : vector<1x128xi32>
    %c0_i32_111 = arith.constant 0 : i32
    %170 = vector.broadcast %c0_i32_111 : i32 to vector<1x128xi32>
    %171 = arith.cmpi ne, %169, %170 : vector<1x128xi32>
    %c0_i32_112 = arith.constant 0 : i32
    %172 = vector.broadcast %c0_i32_112 : i32 to vector<1x128xi32>
    %173 = arith.cmpi slt, %169, %172 : vector<1x128xi32>
    %c0_i32_113 = arith.constant 0 : i32
    %174 = arith.cmpi slt, %167, %c0_i32_113 : i32
    %175 = vector.broadcast %174 : i1 to vector<1x128xi1>
    %176 = vector.broadcast %175 : vector<1x128xi1> to vector<1x128xi1>
    %177 = arith.xori %173, %176 : vector<1x128xi1>
    %178 = arith.andi %177, %171 : vector<1x128xi1>
    %179 = vector.broadcast %167 : i32 to vector<1x128xi32>
    %180 = arith.addi %169, %179 : vector<1x128xi32>
    %181 = arith.select %178, %180, %169 : vector<1x128xi1>, vector<1x128xi32>
    %c1_i32_114 = arith.constant 1 : i32
    %182 = vector.broadcast %c1_i32_114 : i32 to vector<1x128xi32>
    %183 = arith.cmpi slt, %181, %182 : vector<1x128xi32>
    %c1_i32_115 = arith.constant 1 : i32
    %184 = tpu.dynamic_rotate %165 by %c1_i32_115 dim 1 : vector<2x128xf32>, i32 -> vector<2x128xf32>
    %185 = vector.shape_cast %183 : vector<1x128xi1> to vector<1x128xi1>
    %186 = vector.broadcast %185 : vector<1x128xi1> to vector<2x128xi1>
    %187 = arith.select %186, %161, %184 : vector<2x128xi1>, vector<2x128xf32>
    %c0_116 = arith.constant 0 : index
    %c0_117 = arith.constant 0 : index
    %188 = vector.load %arg7[%c0_116, %c0_117] : memref<2x128xf32, #tpu.memory_space<vmem>>, vector<2x128xf32>
    tpu.vector_store %arg7[%c0_116, %c0_117], %187 {strides = array<i32>} : memref<2x128xf32, #tpu.memory_space<vmem>>, vector<2x128xf32>,
    return
  }
}

</mosaic_0001>

<llo_original>
// kernel: tpu_custom_call.1
$region0: #{tpu_custom_call.1}
  #allocation0 [shape = 'u32[]', space=smem, size = 0x4, offset = 0x4, fixed_abs, tag = 'smem constant byte address 0x4 - core index']
  #allocation1 [shape = 'u32[72,128]{1,0:T(1,128)}', space=vmem, size = 0x9000, scoped, tag = 'internal scratch']
  #allocation2 [shape = 'f32[32,128]{1,0:T(8,128)}', space=vmem, size = 0x4000, scoped, tag = 'scratch operand']
  %s0 = inlined_call_operand.hbm [shape: f32[2,128], index: 0, kind: input, shape index: {}]
  %s1 = inlined_call_operand.hbm [shape: f32[4,32], index: 1, kind: input, shape index: {}]
  %s2 = inlined_call_operand.hbm [shape: f32[8,32], index: 2, kind: input, shape index: {}]
  %s3 = inlined_call_operand.hbm [shape: f32[16,32], index: 3, kind: input, shape index: {}]
  %s4 = inlined_call_operand.hbm [shape: f32[2,8,32], index: 4, kind: input, shape index: {}]
  %s5 = inlined_call_operand.hbm [shape: f32[2,4,32], index: 5, kind: input, shape index: {}]
  %s6 = inlined_call_operand.vmem [shape: f32[2,2,32], index: 6, kind: input, shape index: {}]
  %s7 = inlined_call_operand.hbm [shape: f32[2,128], index: 7, kind: output, shape index: {}]
  %s8 = sld [smem:[#allocation0]]
  $region62: #{tpu_custom_call.1} parent=0
    _
  %s10 = ssub.s32 1, %s8
  %s11 = scalar_select 0, %s10, %s8
  $region1: #{tpu_custom_call.1} parent=0
    #allocation3 [shape = 'u8[1024]{0}', space=vmem, size = 0x400, scoped, tag = 'input window, operand 0, single buffered']
    #allocation4 [shape = 's32[1]{0}', space=sflag, size = 0x4, scoped, tag = 'scoped memory for tpu_custom_call.1']
    #allocation5 [shape = 's32[1]{0}', space=sflag, size = 0x4, scoped, tag = 'scoped memory for tpu_custom_call.1']
    #allocation6 [shape = 'u8[2048]{0}', space=vmem, size = 0x800, scoped, tag = 'input window, operand 1, single buffered']
    #allocation7 [shape = 's32[1]{0}', space=sflag, size = 0x4, scoped, tag = 'scoped memory for tpu_custom_call.1']
    #allocation8 [shape = 'u8[4096]{0}', space=vmem, size = 0x1000, scoped, tag = 'input window, operand 2, single buffered']
    #allocation9 [shape = 'u8[8192]{0}', space=vmem, size = 0x2000, scoped, tag = 'input window, operand 3, single buffered']
    #allocation10 [shape = 's32[1]{0}', space=sflag, size = 0x4, scoped, tag = 'scoped memory for tpu_custom_call.1']
    #allocation11 [shape = 'u8[8192]{0}', space=vmem, size = 0x2000, scoped, tag = 'input window, operand 4, single buffered']
    #allocation12 [shape = 'u8[4096]{0}', space=vmem, size = 0x1000, scoped, tag = 'input window, operand 5, single buffered']
    #allocation13 [shape = 's32[1]{0}', space=sflag, size = 0x4, scoped, tag = 'scoped memory for tpu_custom_call.1']
    #allocation14 [shape = 'u8[1024]{0}', space=vmem, size = 0x400, scoped, tag = 'output window, operand 0, single buffered']
    %12 = vsyncpa [#allocation4], 0
    %13 = vsyncpa [#allocation7], 0
    %14 = vsyncpa [#allocation10], 0
    %15 = vsyncpa [#allocation13], 0
    %16 = vsyncpa [#allocation5], 0
    // Predicated region
    $region2: #{tpu_custom_call.1} parent=1 // pred_check
      _
    $region3: #{tpu_custom_call.1} parent=1 // pred_check_branch
      %18 = sbr.rel (0) target = $region5
    $region4: #{tpu_custom_call.1} parent=1 // pred_region
      %20 = vsyncadd [#allocation4], 0
      %s22 = sshll.u32 %s0, 4
      %s23 = int_to_ptr.hbm [resolvable:$true] %s22
      %s24 = sshll.u32 [#allocation3], 4
      %s25 = int_to_ptr.vmem [resolvable:$true] %s24
      %27 = dma.hbm_to_vmem [thread:$0]  %s23, 32, %s25, [#allocation4]
    $region5: #{tpu_custom_call.1} parent=1 // pred_fallthru
      _
    // Predicated region
    $region6: #{tpu_custom_call.1} parent=1 // pred_check
      _
    $region7: #{tpu_custom_call.1} parent=1 // pred_check_branch
      %29 = sbr.rel (0) target = $region9
    $region8: #{tpu_custom_call.1} parent=1 // pred_region
      %31 = vsyncadd [#allocation7], 0
      %s33 = sshll.u32 %s1, 4
      %s34 = int_to_ptr.hbm [resolvable:$true] %s33
      %s35 = sshll.u32 [#allocation6], 4
      %s36 = int_to_ptr.vmem [resolvable:$true] %s35
      %38 = dma.hbm_to_vmem [thread:$0]  %s34, 64, %s36, [#allocation7]
    $region9: #{tpu_custom_call.1} parent=1 // pred_fallthru
      _
    // Predicated region
    $region10: #{tpu_custom_call.1} parent=1 // pred_check
      _
    $region11: #{tpu_custom_call.1} parent=1 // pred_check_branch
      %40 = sbr.rel (0) target = $region13
    $region12: #{tpu_custom_call.1} parent=1 // pred_region
      %42 = vsyncadd [#allocation7], 0
      %s44 = sshll.u32 %s2, 4
      %s45 = int_to_ptr.hbm [resolvable:$true] %s44
      %s46 = sshll.u32 [#allocation8], 4
      %s47 = int_to_ptr.vmem [resolvable:$true] %s46
      %49 = dma.hbm_to_vmem [thread:$0]  %s45, 128, %s47, [#allocation7]
    $region13: #{tpu_custom_call.1} parent=1 // pred_fallthru
      _
    // Predicated region
    $region14: #{tpu_custom_call.1} parent=1 // pred_check
      _
    $region15: #{tpu_custom_call.1} parent=1 // pred_check_branch
      %51 = sbr.rel (0) target = $region17
    $region16: #{tpu_custom_call.1} parent=1 // pred_region
      %53 = vsyncadd [#allocation10], 0
      %s54 = sshll.u32 %s3, 4
      %s55 = int_to_ptr.hbm [resolvable:$true] %s54
      %s56 = sshll.u32 [#allocation9], 4
      %s57 = int_to_ptr.vmem [resolvable:$true] %s56
      %62 = dma.hbm_to_vmem [thread:$0]  %s55, 256, %s57, [#allocation10], 128, 128, 8
    $region17: #{tpu_custom_call.1} parent=1 // pred_fallthru
      _
    // Predicated region
    $region18: #{tpu_custom_call.1} parent=1 // pred_check
      _
    $region19: #{tpu_custom_call.1} parent=1 // pred_check_branch
      %64 = sbr.rel (0) target = $region21
    $region20: #{tpu_custom_call.1} parent=1 // pred_region
      %66 = vsyncadd [#allocation10], 0
      %s67 = sshll.u32 %s4, 4
      %s68 = int_to_ptr.hbm [resolvable:$true] %s67
      %s69 = sshll.u32 [#allocation11], 4
      %s70 = int_to_ptr.vmem [resolvable:$true] %s69
      %75 = dma.hbm_to_vmem [thread:$0]  %s68, 256, %s70, [#allocation10], 128, 128, 8
    $region21: #{tpu_custom_call.1} parent=1 // pred_fallthru
      _
    // Predicated region
    $region22: #{tpu_custom_call.1} parent=1 // pred_check
      _
    $region23: #{tpu_custom_call.1} parent=1 // pred_check_branch
      %77 = sbr.rel (0) target = $region25
    $region24: #{tpu_custom_call.1} parent=1 // pred_region
      %79 = vsyncadd [#allocation13], 0
      %s80 = sshll.u32 %s5, 4
      %s81 = int_to_ptr.hbm [resolvable:$true] %s80
      %s82 = sshll.u32 [#allocation12], 4
      %s83 = int_to_ptr.vmem [resolvable:$true] %s82
      %88 = dma.hbm_to_vmem [thread:$0]  %s81, 128, %s83, [#allocation13], 64, 64, 4
    $region25: #{tpu_custom_call.1} parent=1 // pred_fallthru
      _
    // Predicated region
    $region26: #{tpu_custom_call.1} parent=1 // pred_check
      _
    $region27: #{tpu_custom_call.1} parent=1 // pred_check_branch
      %90 = sbr.rel (0) target = $region29
    $region28: #{tpu_custom_call.1} parent=1 // pred_region
      _
    $region29: #{tpu_custom_call.1} parent=1 // pred_fallthru
      _
    // Predicated region
    $region30: #{tpu_custom_call.1} parent=1 // pred_check
      _
    $region31: #{tpu_custom_call.1} parent=1 // pred_check_branch
      %92 = sbr.rel (0) target = $region33
    $region32: #{tpu_custom_call.1} parent=1 // pred_region
      %94 = dma.done [#allocation4], 32
    $region33: #{tpu_custom_call.1} parent=1 // pred_fallthru
      _
    // Predicated region
    $region34: #{tpu_custom_call.1} parent=1 // pred_check
      _
    $region35: #{tpu_custom_call.1} parent=1 // pred_check_branch
      %96 = sbr.rel (0) target = $region37
    $region36: #{tpu_custom_call.1} parent=1 // pred_region
      %98 = dma.done [#allocation7], 64
    $region37: #{tpu_custom_call.1} parent=1 // pred_fallthru
      _
    // Predicated region
    $region38: #{tpu_custom_call.1} parent=1 // pred_check
      _
    $region39: #{tpu_custom_call.1} parent=1 // pred_check_branch
      %100 = sbr.rel (0) target = $region41
    $region40: #{tpu_custom_call.1} parent=1 // pred_region
      %102 = dma.done [#allocation7], 128
    $region41: #{tpu_custom_call.1} parent=1 // pred_fallthru
      _
    // Predicated region
    $region42: #{tpu_custom_call.1} parent=1 // pred_check
      _
    $region43: #{tpu_custom_call.1} parent=1 // pred_check_branch
      %104 = sbr.rel (0) target = $region45
    $region44: #{tpu_custom_call.1} parent=1 // pred_region
      %106 = dma.done [#allocation10], 256
    $region45: #{tpu_custom_call.1} parent=1 // pred_fallthru
      _
    // Predicated region
    $region46: #{tpu_custom_call.1} parent=1 // pred_check
      _
    $region47: #{tpu_custom_call.1} parent=1 // pred_check_branch
      %108 = sbr.rel (0) target = $region49
    $region48: #{tpu_custom_call.1} parent=1 // pred_region
      %110 = dma.done [#allocation10], 256
    $region49: #{tpu_custom_call.1} parent=1 // pred_fallthru
      _
    // Predicated region
    $region50: #{tpu_custom_call.1} parent=1 // pred_check
      _
    $region51: #{tpu_custom_call.1} parent=1 // pred_check_branch
      %112 = sbr.rel (0) target = $region53
    $region52: #{tpu_custom_call.1} parent=1 // pred_region
      %114 = dma.done [#allocation13], 128
    $region53: #{tpu_custom_call.1} parent=1 // pred_fallthru
      _
    %v115 = vlaneseq
    %v116 = vand.u32 %v115, 127
    %vm117 = vcmp.lt.s32.totalorder %v116, 0
    %v118 = vsub.s32 0, %v116
    %v119 = vsel %vm117, %v118, %v116
    %v120 = vshrl.u32 %v119, 6
    %v121 = vand.u32 %v119, 63
    %v122 = vsub.s32 0, %v121
    %v123 = vsel %vm117, %v122, %v121
    %vm124 = vcmp.ne.s32.totalorder %v123, 0
    %vm125 = vcmp.lt.s32.totalorder %v123, 0
    %vm126 = vmand %vm125, %vm124
    %v127 = vadd.s32 %v123, 64
    %v128 = vsel %vm126, %v127, %v123
    %129 = vst [vmem:[#allocation2] sm:$0xff] 0.0
    %130 = vst [vmem:[#allocation2 + $0x8] sm:$0xff] 0.0
    %131 = vst [vmem:[#allocation2 + $0x10] sm:$0xff] 0.0
    %132 = vst [vmem:[#allocation2 + $0x18] sm:$0xff] 0.0
    %133 = vst [vmem:[#allocation2 + $0x18] sm:$0x1] 1.0
    %v134 = vld [vmem:[#allocation3] sm:$0x3]
    %vm135 = vcmp.eq.s32.totalorder %v128, 0
    %136 = vrot.lane.b32.xlu0 %v134, 1
    %v137 = vpop.permute.xlu0 %136
    %v138 = vsel %vm135, 1, 0
    %vm139 = vcmp.eq.s32.totalorder %v138, 1
    %v140 = vsel %vm139, 0.0, %v137
    %vm141 = vcmp.eq.s32.totalorder %v128, 63
    %142 = vrot.lane.b32.xlu0 %v134, 127
    %v143 = vpop.permute.xlu0 %142
    %v144 = vsel %vm141, 1, 0
    %vm145 = vcmp.eq.s32.totalorder %v144, 1
    %v146 = vsel %vm145, 0.0, %v143
    %147 = vst [vmem:[#allocation2] sm:$0x3] %v140
    %148 = vst [vmem:[#allocation2 + $0x8] sm:$0x3] %v134
    %149 = vst [vmem:[#allocation2 + $0x10] sm:$0x3] %v146
    %v150 = vld [vmem:[#allocation6] sm:$0xf]
    %v151 = vld [vmem:[#allocation2] sm:$0xff]
    %v152 = vld [vmem:[#allocation2 + $0x8] sm:$0xff]
    %v153 = vld [vmem:[#allocation2 + $0x10] sm:$0xff]
    %v154 = vld [vmem:[#allocation2 + $0x18] sm:$0xff]
    %vm155 = vcmask 261120
    %v157 = vsel %vm155, %v150, 0
    %159 = vmatpush.msra.mxu0 0.0
    %160 = vmatpush.msra.mxu0 0.0
    %161 = vmatpush.msra.mxu0 0.0
    %162 = vmatpush.msra.mxu0 0.0
    %163 = vmatpush.msra.mxu0 0.0
    %164 = vmatpush.msra.mxu0 0.0
    %165 = vmatpush.msra.mxu0 0.0
    %166 = vmatpush.msra.mxu0 0.0
    %167 = vmatpush.msra.mxu0 0.0
    %168 = vmatpush.msra.mxu0 0.0
    %169 = vmatpush.msra.mxu0 0.0
    %170 = vmatpush.msra.mxu0 0.0
    %171 = vmatpush.msra.mxu0 %v154
    %172 = vmatpush.msra.mxu0 %v153
    %173 = vmatpush.msra.mxu0 %v152
    %174 = vmatpush.msra.mxu0 %v151
    %175 = vmatmul.f32.gmra.mxu0 %v157
    %v176 = vpop.f32.mrf.mxu0
    %v177 = vadd.f32 0.0, %v176
    %178 = vdwg.mxu0
    %v179 = vtanh.pop %v177
    %180 = vrot.lane.b32.xlu0 %v179, 127
    %v181 = vpop.permute.xlu0 %180
    %v182 = vmax.f32 %v179, %v181
    %183 = vrot.lane.b32.xlu0 %v182, 2
    %v184 = vpop.permute.xlu0 %183
    %v185 = vsel %vm139, 0.0, %v184
    %vm186 = vcmp.eq.s32.totalorder %v128, 62
    %187 = vrot.lane.b32.xlu0 %v182, 126
    %v188 = vpop.permute.xlu0 %187
    %v189 = vsel %vm186, 1, 0
    %vm190 = vcmp.eq.s32.totalorder %v189, 1
    %v191 = vsel %vm190, 0.0, %v188
    %192 = vst [vmem:[#allocation2] sm:$0xf] %v185
    %193 = vst [vmem:[#allocation2 + $0x8] sm:$0xf] %v182
    %194 = vst [vmem:[#allocation2 + $0x10] sm:$0xf] %v191
    %v195 = vld [vmem:[#allocation8] sm:$0xff]
    %v196 = vld [vmem:[#allocation2] sm:$0xff]
    %v197 = vld [vmem:[#allocation2 + $0x8] sm:$0xff]
    %v198 = vld [vmem:[#allocation2 + $0x10] sm:$0xff]
    %v199 = vld [vmem:[#allocation2 + $0x18] sm:$0xff]
    %v201 = vsel %vm155, %v195, 0
    %203 = vmatpush.msra.mxu0 0.0
    %204 = vmatpush.msra.mxu0 0.0
    %205 = vmatpush.msra.mxu0 0.0
    %206 = vmatpush.msra.mxu0 0.0
    %207 = vmatpush.msra.mxu0 0.0
    %208 = vmatpush.msra.mxu0 0.0
    %209 = vmatpush.msra.mxu0 0.0
    %210 = vmatpush.msra.mxu0 0.0
    %211 = vmatpush.msra.mxu0 0.0
    %212 = vmatpush.msra.mxu0 0.0
    %213 = vmatpush.msra.mxu0 0.0
    %214 = vmatpush.msra.mxu0 0.0
    %215 = vmatpush.msra.mxu0 %v199
    %216 = vmatpush.msra.mxu0 %v198
    %217 = vmatpush.msra.mxu0 %v197
    %218 = vmatpush.msra.mxu0 %v196
    %219 = vmatmul.f32.gmra.mxu0 %v201
    %v220 = vpop.f32.mrf.mxu0
    %v221 = vadd.f32 0.0, %v220
    %222 = vdwg.mxu0
    %v223 = vtanh.pop %v221
    %224 = vrot.lane.b32.xlu0 %v223, 126
    %v225 = vpop.permute.xlu0 %224
    %v226 = vmax.f32 %v223, %v225
    %227 = vrot.lane.b32.xlu0 %v226, 4
    %v228 = vpop.permute.xlu0 %227
    %v229 = vsel %vm139, 0.0, %v228
    %vm230 = vcmp.eq.s32.totalorder %v128, 60
    %231 = vrot.lane.b32.xlu0 %v226, 124
    %v232 = vpop.permute.xlu0 %231
    %v233 = vsel %vm230, 1, 0
    %vm234 = vcmp.eq.s32.totalorder %v233, 1
    %v235 = vsel %vm234, 0.0, %v232
    %236 = vst [vmem:[#allocation2] sm:$0xff] %v229
    %237 = vst [vmem:[#allocation2 + $0x8] sm:$0xff] %v226
    %238 = vst [vmem:[#allocation2 + $0x10] sm:$0xff] %v235
    %v239 = vld [vmem:[#allocation9] sm:$0xff]
    %v240 = vld [vmem:[#allocation9 + $0x8] sm:$0xff]
    %v241 = vld [vmem:[#allocation2] sm:$0xff]
    %v242 = vld [vmem:[#allocation2 + $0x8] sm:$0xff]
    %v243 = vld [vmem:[#allocation2 + $0x10] sm:$0xff]
    %v244 = vld [vmem:[#allocation2 + $0x18] sm:$0xff]
    %v246 = vsel %vm155, %v239, 0
    %v249 = vsel %vm155, %v240, 0
    %251 = vmatpush.msra.mxu0 0.0
    %252 = vmatpush.msra.mxu0 0.0
    %253 = vmatpush.msra.mxu0 0.0
    %254 = vmatpush.msra.mxu0 0.0
    %255 = vmatpush.msra.mxu0 0.0
    %256 = vmatpush.msra.mxu0 0.0
    %257 = vmatpush.msra.mxu0 0.0
    %258 = vmatpush.msra.mxu0 0.0
    %259 = vmatpush.msra.mxu0 0.0
    %260 = vmatpush.msra.mxu0 0.0
    %261 = vmatpush.msra.mxu0 0.0
    %262 = vmatpush.msra.mxu0 0.0
    %263 = vmatpush.msra.mxu0 %v244
    %264 = vmatpush.msra.mxu0 %v243
    %265 = vmatpush.msra.mxu0 %v242
    %266 = vmatpush.msra.mxu0 %v241
    %267 = vmatmul.f32.gmra.mxu0 %v246
    %v268 = vpop.f32.mrf.mxu0
    %v269 = vadd.f32 0.0, %v268
    %270 = vmatmul.f32.gmra.mxu0 %v249
    %v271 = vpop.f32.mrf.mxu0
    %v272 = vadd.f32 0.0, %v271
    %273 = vdwg.mxu0
    %v274 = vtanh.pop %v269
    %v275 = vtanh.pop %v272
    %276 = vrot.lane.b32.xlu0 %v274, 124
    %v277 = vpop.permute.xlu0 %276
    %278 = vrot.lane.b32.xlu0 %v275, 124
    %v279 = vpop.permute.xlu0 %278
    %v280 = vmax.f32 %v274, %v277
    %v281 = vmax.f32 %v275, %v279
    %282 = vst [vmem:[#allocation2] sm:$0xff] %v280
    %283 = vst [vmem:[#allocation2 + $0x8] sm:$0xff] %v281
    %v284 = vld [vmem:[#allocation11] sm:$0xff]
    %v285 = vld [vmem:[#allocation2] sm:$0xff]
    %v286 = vld [vmem:[#allocation2 + $0x8] sm:$0xff]
    %v287 = vld [vmem:[#allocation2 + $0x10] sm:$0xff]
    %v288 = vld [vmem:[#allocation2 + $0x18] sm:$0xff]
    %v290 = vsel %vm155, %v284, 0
    %292 = vmatpush.msra.mxu0 0.0
    %293 = vmatpush.msra.mxu0 0.0
    %294 = vmatpush.msra.mxu0 0.0
    %295 = vmatpush.msra.mxu0 0.0
    %296 = vmatpush.msra.mxu0 0.0
    %297 = vmatpush.msra.mxu0 0.0
    %298 = vmatpush.msra.mxu0 0.0
    %299 = vmatpush.msra.mxu0 0.0
    %300 = vmatpush.msra.mxu0 0.0
    %301 = vmatpush.msra.mxu0 0.0
    %302 = vmatpush.msra.mxu0 0.0
    %303 = vmatpush.msra.mxu0 0.0
    %304 = vmatpush.msra.mxu0 %v288
    %305 = vmatpush.msra.mxu0 %v287
    %306 = vmatpush.msra.mxu0 %v286
    %307 = vmatpush.msra.mxu0 %v285
    %308 = vmatmul.f32.gmra.mxu0 %v290
    %v309 = vpop.f32.mrf.mxu0
    %v310 = vadd.f32 0.0, %v309
    %311 = vdwg.mxu0
    %s312 = scalar_lea.vmem [#allocation11], 8
    %v313 = vld [vmem:[%s312] sm:$0xff]
    %v315 = vsel %vm155, %v313, 0
    %317 = vmatpush.msra.mxu0 0.0
    %318 = vmatpush.msra.mxu0 0.0
    %319 = vmatpush.msra.mxu0 0.0
    %320 = vmatpush.msra.mxu0 0.0
    %321 = vmatpush.msra.mxu0 0.0
    %322 = vmatpush.msra.mxu0 0.0
    %323 = vmatpush.msra.mxu0 0.0
    %324 = vmatpush.msra.mxu0 0.0
    %325 = vmatpush.msra.mxu0 0.0
    %326 = vmatpush.msra.mxu0 0.0
    %327 = vmatpush.msra.mxu0 0.0
    %328 = vmatpush.msra.mxu0 0.0
    %329 = vmatpush.msra.mxu0 %v288
    %330 = vmatpush.msra.mxu0 %v287
    %331 = vmatpush.msra.mxu0 %v286
    %332 = vmatpush.msra.mxu0 %v285
    %333 = vmatmul.f32.gmra.mxu0 %v315
    %v334 = vpop.f32.mrf.mxu0
    %v335 = vadd.f32 0.0, %v334
    %336 = vdwg.mxu0
    %vm337 = vcmp.lt.s32.totalorder %v128, 0
    %v338 = vsub.s32 0, %v128
    %v339 = vsel %vm337, %v338, %v128
    %v340 = vshrl.u32 %v339, 3
    %v341 = vand.u32 %v339, 7
    %v342 = vsub.s32 0, %v341
    %v343 = vsel %vm337, %v342, %v341
    %vm344 = vcmp.ne.s32.totalorder %v343, 0
    %vm345 = vcmp.lt.s32.totalorder %v343, 0
    %vm346 = vmand %vm345, %vm344
    %v347 = vadd.s32 %v343, 8
    %v348 = vsel %vm346, %v347, %v343
    %vm349 = vcmp.lt.s32.totalorder %v348, 4
    %350 = vrot.lane.b32.xlu0 %v335, 4
    %v351 = vpop.permute.xlu0 %350
    %v352 = vsel %vm349, 1, 0
    %vm353 = vcmp.eq.s32.totalorder %v352, 1
    %v354 = vsel %vm353, %v310, %v351
    %v355 = vadd.f32 %v354, %v226
    %v356 = vtanh.pop %v355
    %357 = vst [vmem:[#allocation2] sm:$0xff] %v356
    %v358 = vld [vmem:[#allocation12] sm:$0xf]
    %v359 = vld [vmem:[#allocation2] sm:$0xff]
    %v360 = vld [vmem:[#allocation2 + $0x8] sm:$0xff]
    %v361 = vld [vmem:[#allocation2 + $0x10] sm:$0xff]
    %v362 = vld [vmem:[#allocation2 + $0x18] sm:$0xff]
    %v364 = vsel %vm155, %v358, 0
    %366 = vmatpush.msra.mxu0 0.0
    %367 = vmatpush.msra.mxu0 0.0
    %368 = vmatpush.msra.mxu0 0.0
    %369 = vmatpush.msra.mxu0 0.0
    %370 = vmatpush.msra.mxu0 0.0
    %371 = vmatpush.msra.mxu0 0.0
    %372 = vmatpush.msra.mxu0 0.0
    %373 = vmatpush.msra.mxu0 0.0
    %374 = vmatpush.msra.mxu0 0.0
    %375 = vmatpush.msra.mxu0 0.0
    %376 = vmatpush.msra.mxu0 0.0
    %377 = vmatpush.msra.mxu0 0.0
    %378 = vmatpush.msra.mxu0 %v362
    %379 = vmatpush.msra.mxu0 %v361
    %380 = vmatpush.msra.mxu0 %v360
    %381 = vmatpush.msra.mxu0 %v359
    %382 = vmatmul.f32.gmra.mxu0 %v364
    %v383 = vpop.f32.mrf.mxu0
    %v384 = vadd.f32 0.0, %v383
    %385 = vdwg.mxu0
    %s386 = scalar_lea.vmem [#allocation12], 4
    %v387 = vld [vmem:[%s386] sm:$0xf]
    %v389 = vsel %vm155, %v387, 0
    %391 = vmatpush.msra.mxu0 0.0
    %392 = vmatpush.msra.mxu0 0.0
    %393 = vmatpush.msra.mxu0 0.0
    %394 = vmatpush.msra.mxu0 0.0
    %395 = vmatpush.msra.mxu0 0.0
    %396 = vmatpush.msra.mxu0 0.0
    %397 = vmatpush.msra.mxu0 0.0
    %398 = vmatpush.msra.mxu0 0.0
    %399 = vmatpush.msra.mxu0 0.0
    %400 = vmatpush.msra.mxu0 0.0
    %401 = vmatpush.msra.mxu0 0.0
    %402 = vmatpush.msra.mxu0 0.0
    %403 = vmatpush.msra.mxu0 %v362
    %404 = vmatpush.msra.mxu0 %v361
    %405 = vmatpush.msra.mxu0 %v360
    %406 = vmatpush.msra.mxu0 %v359
    %407 = vmatmul.f32.gmra.mxu0 %v389
    %v408 = vpop.f32.mrf.mxu0
    %v409 = vadd.f32 0.0, %v408
    %410 = vdwg.mxu0
    %vm411 = vcmp.lt.s32.totalorder %v128, 0
    %v412 = vsub.s32 0, %v128
    %v413 = vsel %vm411, %v412, %v128
    %v414 = vshrl.u32 %v413, 2
    %v415 = vand.u32 %v413, 3
    %v416 = vsub.s32 0, %v415
    %v417 = vsel %vm411, %v416, %v415
    %vm418 = vcmp.ne.s32.totalorder %v417, 0
    %vm419 = vcmp.lt.s32.totalorder %v417, 0
    %vm420 = vmand %vm419, %vm418
    %v421 = vadd.s32 %v417, 4
    %v422 = vsel %vm420, %v421, %v417
    %vm423 = vcmp.lt.s32.totalorder %v422, 2
    %424 = vrot.lane.b32.xlu0 %v409, 2
    %v425 = vpop.permute.xlu0 %424
    %v426 = vsel %vm423, 1, 0
    %vm427 = vcmp.eq.s32.totalorder %v426, 1
    %v428 = vsel %vm427, %v384, %v425
    %v429 = vadd.f32 %v428, %v182
    %v430 = vtanh.pop %v429
    %431 = vst [vmem:[#allocation2] sm:$0xf] %v430
    %v432 = vld [vmem:[%s6] sm:$0x3]
    %v433 = vld [vmem:[#allocation2] sm:$0xff]
    %v434 = vld [vmem:[#allocation2 + $0x8] sm:$0xff]
    %v435 = vld [vmem:[#allocation2 + $0x10] sm:$0xff]
    %v436 = vld [vmem:[#allocation2 + $0x18] sm:$0xff]
    %v438 = vsel %vm155, %v432, 0
    %440 = vmatpush.msra.mxu0 0.0
    %441 = vmatpush.msra.mxu0 0.0
    %442 = vmatpush.msra.mxu0 0.0
    %443 = vmatpush.msra.mxu0 0.0
    %444 = vmatpush.msra.mxu0 0.0
    %445 = vmatpush.msra.mxu0 0.0
    %446 = vmatpush.msra.mxu0 0.0
    %447 = vmatpush.msra.mxu0 0.0
    %448 = vmatpush.msra.mxu0 0.0
    %449 = vmatpush.msra.mxu0 0.0
    %450 = vmatpush.msra.mxu0 0.0
    %451 = vmatpush.msra.mxu0 0.0
    %452 = vmatpush.msra.mxu0 %v436
    %453 = vmatpush.msra.mxu0 %v435
    %454 = vmatpush.msra.mxu0 %v434
    %455 = vmatpush.msra.mxu0 %v433
    %456 = vmatmul.f32.gmra.mxu0 %v438
    %v457 = vpop.f32.mrf.mxu0
    %v458 = vadd.f32 0.0, %v457
    %459 = vdwg.mxu0
    %s460 = scalar_lea.vmem %s6, 2
    %v461 = vld [vmem:[%s460] sm:$0x3]
    %v463 = vsel %vm155, %v461, 0
    %465 = vmatpush.msra.mxu0 0.0
    %466 = vmatpush.msra.mxu0 0.0
    %467 = vmatpush.msra.mxu0 0.0
    %468 = vmatpush.msra.mxu0 0.0
    %469 = vmatpush.msra.mxu0 0.0
    %470 = vmatpush.msra.mxu0 0.0
    %471 = vmatpush.msra.mxu0 0.0
    %472 = vmatpush.msra.mxu0 0.0
    %473 = vmatpush.msra.mxu0 0.0
    %474 = vmatpush.msra.mxu0 0.0
    %475 = vmatpush.msra.mxu0 0.0
    %476 = vmatpush.msra.mxu0 0.0
    %477 = vmatpush.msra.mxu0 %v436
    %478 = vmatpush.msra.mxu0 %v435
    %479 = vmatpush.msra.mxu0 %v434
    %480 = vmatpush.msra.mxu0 %v433
    %481 = vmatmul.f32.gmra.mxu0 %v463
    %v482 = vpop.f32.mrf.mxu0
    %v483 = vadd.f32 0.0, %v482
    %484 = vdwg.mxu0
    %vm485 = vcmp.lt.s32.totalorder %v128, 0
    %v486 = vsub.s32 0, %v128
    %v487 = vsel %vm485, %v486, %v128
    %v488 = vshrl.u32 %v487, 1
    %v489 = vand.u32 %v487, 1
    %v490 = vsub.s32 0, %v489
    %v491 = vsel %vm485, %v490, %v489
    %vm492 = vcmp.ne.s32.totalorder %v491, 0
    %vm493 = vcmp.lt.s32.totalorder %v491, 0
    %vm494 = vmand %vm493, %vm492
    %v495 = vadd.s32 %v491, 2
    %v496 = vsel %vm494, %v495, %v491
    %vm497 = vcmp.lt.s32.totalorder %v496, 1
    %498 = vrot.lane.b32.xlu0 %v483, 1
    %v499 = vpop.permute.xlu0 %498
    %v500 = vsel %vm497, 1, 0
    %vm501 = vcmp.eq.s32.totalorder %v500, 1
    %v502 = vsel %vm501, %v458, %v499
    %503 = vst [vmem:[#allocation14] sm:$0x3] %v502
    // Predicated region
    $region54: #{tpu_custom_call.1} parent=1 // pred_check
      _
    $region55: #{tpu_custom_call.1} parent=1 // pred_check_branch
      %505 = sbr.rel (0) target = $region57
    $region56: #{tpu_custom_call.1} parent=1 // pred_region
      %507 = vsyncadd [#allocation5], 0
      %s509 = sshll.u32 [#allocation14], 4
      %s510 = int_to_ptr.vmem [resolvable:$true] %s509
      %s511 = sshll.u32 %s7, 4
      %s512 = int_to_ptr.hbm [resolvable:$true] %s511
      %514 = dma.vmem_to_hbm [thread:$0]  %s510, 32, %s512, [#allocation5]
    $region57: #{tpu_custom_call.1} parent=1 // pred_fallthru
      _
    // Predicated region
    $region58: #{tpu_custom_call.1} parent=1 // pred_check
      _
    $region59: #{tpu_custom_call.1} parent=1 // pred_check_branch
      %516 = sbr.rel (0) target = $region61
    $region60: #{tpu_custom_call.1} parent=1 // pred_region
      %518 = dma.done [#allocation5], 32
    $region61: #{tpu_custom_call.1} parent=1 // pred_fallthru
      _
    %519 = vsyncpa [#allocation4], 1
    %520 = vsyncpa [#allocation7], 1
    %521 = vsyncpa [#allocation10], 1
    %522 = vsyncpa [#allocation13], 1
    %523 = vsyncpa [#allocation5], 1

</llo_original>
